<compile_context>
chip_gen: v5e
topology: v5e:2x2
jax: 0.10.0
libtpu: 0.0.40
codegen_flags: <defaults>
</compile_context>

<pallas_src>
import jax
import jax.numpy as jnp
from jax.experimental import pallas as pl
from jax.experimental.pallas import tpu as pltpu


def _round_up(x, m):
    return (x + m - 1) // m * m


def _gw_gcn_kernel(x_ref, gwr_w_ref, adj_ref, w_ref, b_ref, out_ref, acc_ref):
    k = pl.program_id(1)

    @pl.when(k == 0)
    def _():
        acc_ref[...] = jnp.zeros_like(acc_ref)

    # Geographically weighted scaling of the current k-slab (VPU, free filler
    # under the DMA-bound reduction loop).  Inputs arrive already in the MXU
    # dtype chosen by the wrapper (f32 or bf16) — no in-kernel cast.
    gwr_support = x_ref[...] * gwr_w_ref[...]          # (tk, f_in)

    # Graph-aggregation partial sum (MXU), f32 accumulation in VMEM scratch.
    acc_ref[...] += jnp.dot(adj_ref[...], gwr_support,
                            preferred_element_type=jnp.float32)

    # Finalize once per row tile: tiny feature transform + bias + tanh, all in
    # f32 (keeps the accumulated precision; this matmul costs ~nothing).
    # Stored lane-dense (f_out padded to a multiple of 128).
    @pl.when(k == pl.num_programs(1) - 1)
    def _():
        out = jnp.dot(acc_ref[...], w_ref[...],
                      preferred_element_type=jnp.float32)
        out = out + b_ref[...]
        out_ref[...] = jnp.tanh(out).astype(out_ref.dtype)


def gw_graph_convolution(x, adj, gwr_weight, weight, bias, *,
                         tm=256, tk=512, mxu_dtype=None, adj_buffers=None,
                         vmem_limit_bytes=48 * 1024 * 1024):
    """GW graph convolution: tanh((adj @ (x * gwr_weight)) @ weight + bias).

    Tiled over (row tiles, reduction tiles); weight and bias stay resident in
    VMEM.  `mxu_dtype=jnp.bfloat16` casts adj / x / gwr_weight to bf16 in the
    wrapper (before the DMA), halving the dominant adj HBM stream; the graph
    matmul still accumulates in f32 and the finalize runs fully in f32.
    `adj_buffers=3` deepens the adj pipeline if its DMA is still exposed.
    """
    N, f_in = x.shape
    f_out = weight.shape[1]
    assert adj.shape == (N, N)
    assert gwr_weight.shape == (N, f_in)
    out_dtype = x.dtype

    # Clamp tiles to the (aligned) graph size so small graphs don't pay for
    # huge padded tiles; keep tm a multiple of 8 (sublanes) and tk a multiple
    # of 128 (lanes).
    tm = _round_up(max(8, min(tm, _round_up(N, 8))), 8)
    tk = _round_up(max(128, min(tk, _round_up(N, 128))), 128)

    # Pad: rows to tm, the graph (reduction) dim to tk, and the output
    # feature dim to a multiple of 128 (lane-dense unmasked stores).
    nm = _round_up(N, tm)
    nk = _round_up(N, tk)
    f_out_p = _round_up(f_out, 128)

    # Cast *before* the pallas_call so the HBM DMA itself shrinks.
    adj_dtype = mxu_dtype if mxu_dtype is not None else adj.dtype
    feat_dtype = mxu_dtype if mxu_dtype is not None else x.dtype

    x_p = jnp.zeros((nk, f_in), feat_dtype).at[:N, :].set(x.astype(feat_dtype))
    gwr_p = jnp.zeros((nk, f_in), feat_dtype).at[:N, :].set(
        gwr_weight.astype(feat_dtype))
    adj_p = jnp.zeros((nm, nk), adj_dtype).at[:N, :N].set(
        adj.astype(adj_dtype))
    # Weight / bias stay f32: the finalize matmul is tiny and keeps the f32
    # accumulated precision.
    w_p = jnp.zeros((f_in, f_out_p), jnp.float32).at[:, :f_out].set(
        weight.astype(jnp.float32))
    b_p = jnp.zeros((1, f_out_p), jnp.float32).at[0, :f_out].set(
        bias.reshape(-1).astype(jnp.float32))

    grid = (nm // tm, nk // tk)

    # Honest bytes: adj once; the x/gwr slabs are re-read once per row tile.
    adj_bytes = nm * nk * jnp.dtype(adj_dtype).itemsize
    slab_bytes = (nm // tm) * 2 * nk * f_in * jnp.dtype(feat_dtype).itemsize
    param_bytes = (f_in * f_out_p + f_out_p) * 4
    out_bytes = nm * f_out_p * jnp.dtype(out_dtype).itemsize
    cost = pl.CostEstimate(
        flops=2 * nm * nk * f_in + 2 * nm * f_in * f_out_p,
        transcendentals=nm * f_out_p,
        bytes_accessed=adj_bytes + slab_bytes + param_bytes + out_bytes,
    )

    adj_spec_kwargs = {}
    if adj_buffers is not None:
        adj_spec_kwargs["pipeline_mode"] = pl.Buffered(adj_buffers)
    adj_spec = pl.BlockSpec((tm, tk), lambda i, k: (i, k), **adj_spec_kwargs)

    out_p = pl.pallas_call(
        _gw_gcn_kernel,
        out_shape=jax.ShapeDtypeStruct((nm, f_out_p), out_dtype),
        grid_spec=pltpu.PrefetchScalarGridSpec(
            num_scalar_prefetch=0,
            grid=grid,
            in_specs=[
                pl.BlockSpec((tk, f_in), lambda i, k: (k, 0)),       # x slab
                pl.BlockSpec((tk, f_in), lambda i, k: (k, 0)),       # gwr slab
                adj_spec,                                            # adj tile
                pl.BlockSpec((f_in, f_out_p), lambda i, k: (0, 0)),  # weight
                pl.BlockSpec((1, f_out_p), lambda i, k: (0, 0)),     # bias
            ],
            out_specs=pl.BlockSpec((tm, f_out_p), lambda i, k: (i, 0)),
            scratch_shapes=[pltpu.VMEM((tm, f_in), jnp.float32)],
        ),
        compiler_params=pltpu.CompilerParams(
            dimension_semantics=("parallel", "arbitrary"),
            vmem_limit_bytes=vmem_limit_bytes,
        ),
        cost_estimate=cost,
    )(x_p, gwr_p, adj_p, w_p, b_p)

    return out_p[:N, :f_out]


def reference(x, adj, gwr_weight, weight, bias):
    gwr_support = x * gwr_weight
    support = adj @ gwr_support
    return jnp.tanh(support @ weight + bias)


if __name__ == "__main__":
    key = jax.random.PRNGKey(0)

    def make_inputs(N, f_in, f_out):
        k_x, k_adj = jax.random.split(jax.random.fold_in(key, N))
        x = jax.random.normal(k_x, (N, f_in), dtype=jnp.float32)
        adj = jax.random.uniform(k_adj, (N, N), dtype=jnp.float32)
        # Parameters as in initialize_weights(): weight=1, gwr_weight=1, bias=0.
        gwr_weight = jnp.ones((N, f_in), dtype=jnp.float32)
        weight = jnp.ones((f_in, f_out), dtype=jnp.float32)
        bias = jnp.zeros((f_out,), dtype=jnp.float32)
        return x, adj, gwr_weight, weight, bias

    def run_case(N, f_in, f_out, **kw):
        x, adj, gwr_weight, weight, bias = make_inputs(N, f_in, f_out)
        out = gw_graph_convolution(x, adj, gwr_weight, weight, bias, **kw)
        out = jax.block_until_ready(out)
        ref = reference(x, adj, gwr_weight, weight, bias)
        assert out.shape == (N, f_out)
        err = float(jnp.max(jnp.abs(out - ref)))
        assert jnp.allclose(out, ref, atol=1e-4, rtol=1e-4), err

    # Module-default small shape (heavy padding path, 1x1 grid, clamped tiles).
    run_case(N=16, f_in=8, f_out=32)
    # Larger graph exercising the tiled row x reduction grid (3 x 2) with
    # non-multiple N (zero-padded edges).
    run_case(N=600, f_in=8, f_out=32)

    # bf16-adj bandwidth path: compare against a reference that sees the same
    # bf16-rounded inputs (the MXU still accumulates in f32).
    N, f_in, f_out = 256, 8, 32
    x, adj, gwr_weight, weight, bias = make_inputs(N, f_in, f_out)
    out_bf16 = gw_graph_convolution(x, adj, gwr_weight, weight, bias,
                                    mxu_dtype=jnp.bfloat16)
    out_bf16 = jax.block_until_ready(out_bf16)
    ref_bf16 = reference(
        x.astype(jnp.bfloat16).astype(jnp.float32),
        adj.astype(jnp.bfloat16).astype(jnp.float32),
        gwr_weight, weight, bias)
    assert out_bf16.shape == (N, f_out)
    err = float(jnp.max(jnp.abs(out_bf16 - ref_bf16)))
    assert jnp.allclose(out_bf16, ref_bf16, atol=1e-2, rtol=1e-2), err

    print("KERNEL_OK")
</pallas_src>

<mosaic_0001>
module attributes {stable_mosaic.version = 11 : i64} {
  func.func @_gw_gcn_kernel(%arg0: i32, %arg1: i32, %arg2: memref<128x8xf32, #tpu.memory_space<vmem>>, %arg3: memref<128x8xf32, #tpu.memory_space<vmem>>, %arg4: memref<16x128xf32, #tpu.memory_space<vmem>>, %arg5: memref<8x128xf32, #tpu.memory_space<vmem>>, %arg6: memref<1x128xf32, #tpu.memory_space<vmem>>, %arg7: memref<16x128xf32, #tpu.memory_space<vmem>>, %arg8: memref<16x8xf32, #tpu.memory_space<vmem>>) attributes {dimension_semantics = [#tpu.dimension_semantics<parallel>, #tpu.dimension_semantics<arbitrary>], iteration_bounds = array<i64: 1, 1>, scalar_prefetch = 0 : i64, scratch_operands = 1 : i64, tpu.core_type = #tpu.core_type<tc>, window_params = [{transform_indices = @transform_0, window_bounds = array<i64: 128, 8>}, {transform_indices = @transform_1, window_bounds = array<i64: 128, 8>}, {transform_indices = @transform_2, window_bounds = array<i64: 16, 128>}, {pipeline_mode = #tpu.pipeline_mode<synchronous>, transform_indices = @transform_3, window_bounds = array<i64: 8, 128>}, {pipeline_mode = #tpu.pipeline_mode<synchronous>, transform_indices = @transform_4, window_bounds = array<i64: 1, 128>}, {transform_indices = @transform_5, window_bounds = array<i64: 16, 128>}]} {
    %c0_i32 = arith.constant 0 : i32
    %0 = arith.cmpi eq, %arg1, %c0_i32 : i32
    %1 = arith.extui %0 : i1 to i32
    %c0_i32_0 = arith.constant 0 : i32
    %2 = arith.cmpi ne, %1, %c0_i32_0 : i32
    scf.if %2 {
      %cst_12 = arith.constant 0.000000e+00 : f32
      %14 = vector.broadcast %cst_12 : f32 to vector<16x8xf32>
      %c0_13 = arith.constant 0 : index
      %c0_14 = arith.constant 0 : index
      %15 = vector.load %arg8[%c0_13, %c0_14] : memref<16x8xf32, #tpu.memory_space<vmem>>, vector<16x8xf32>
      tpu.vector_store %arg8[%c0_13, %c0_14], %14 {strides = array<i32>} : memref<16x8xf32, #tpu.memory_space<vmem>>, vector<16x8xf32>,
    } else {
    }
    %c0 = arith.constant 0 : index
    %c0_1 = arith.constant 0 : index
    %3 = vector.load %arg2[%c0, %c0_1] : memref<128x8xf32, #tpu.memory_space<vmem>>, vector<128x8xf32>
    %c0_2 = arith.constant 0 : index
    %c0_3 = arith.constant 0 : index
    %4 = vector.load %arg3[%c0_2, %c0_3] : memref<128x8xf32, #tpu.memory_space<vmem>>, vector<128x8xf32>
    %5 = arith.mulf %3, %4 : vector<128x8xf32>
    %c0_4 = arith.constant 0 : index
    %c0_5 = arith.constant 0 : index
    %6 = vector.load %arg8[%c0_4, %c0_5] : memref<16x8xf32, #tpu.memory_space<vmem>>, vector<16x8xf32>
    %c0_6 = arith.constant 0 : index
    %c0_7 = arith.constant 0 : index
    %7 = vector.load %arg4[%c0_6, %c0_7] : memref<16x128xf32, #tpu.memory_space<vmem>>, vector<16x128xf32>
    %cst = arith.constant dense<0.000000e+00> : vector<16x8xf32>
    %8 = tpu.matmul %7, %5, %cst {dimension_numbers = #tpu.dot_dimension_numbers<[1], [0], [0], [1], [0, 0, 1, 1], [], []>} : vector<16x128xf32>, vector<128x8xf32>, vector<16x8xf32> -> vector<16x8xf32>
    %9 = arith.addf %6, %8 : vector<16x8xf32>
    %c0_8 = arith.constant 0 : index
    %c0_9 = arith.constant 0 : index
    %10 = vector.load %arg8[%c0_8, %c0_9] : memref<16x8xf32, #tpu.memory_space<vmem>>, vector<16x8xf32>
    tpu.vector_store %arg8[%c0_8, %c0_9], %9 {strides = array<i32>} : memref<16x8xf32, #tpu.memory_space<vmem>>, vector<16x8xf32>,
    %c0_i32_10 = arith.constant 0 : i32
    %11 = arith.cmpi eq, %arg1, %c0_i32_10 : i32
    %12 = arith.extui %11 : i1 to i32
    %c0_i32_11 = arith.constant 0 : i32
    %13 = arith.cmpi ne, %12, %c0_i32_11 : i32
    scf.if %13 {
      %c0_12 = arith.constant 0 : index
      %c0_13 = arith.constant 0 : index
      %14 = vector.load %arg8[%c0_12, %c0_13] : memref<16x8xf32, #tpu.memory_space<vmem>>, vector<16x8xf32>
      %c0_14 = arith.constant 0 : index
      %c0_15 = arith.constant 0 : index
      %15 = vector.load %arg5[%c0_14, %c0_15] : memref<8x128xf32, #tpu.memory_space<vmem>>, vector<8x128xf32>
      %cst_16 = arith.constant dense<0.000000e+00> : vector<16x128xf32>
      %16 = tpu.matmul %14, %15, %cst_16 {dimension_numbers = #tpu.dot_dimension_numbers<[1], [0], [0], [1], [0, 0, 1, 1], [], []>} : vector<16x8xf32>, vector<8x128xf32>, vector<16x128xf32> -> vector<16x128xf32>
      %c0_17 = arith.constant 0 : index
      %c0_18 = arith.constant 0 : index
      %17 = vector.load %arg6[%c0_17, %c0_18] : memref<1x128xf32, #tpu.memory_space<vmem>>, vector<1x128xf32>
      %18 = vector.broadcast %17 : vector<1x128xf32> to vector<16x128xf32>
      %19 = arith.addf %16, %18 : vector<16x128xf32>
      %20 = math.tanh %19 : vector<16x128xf32>
      %c0_19 = arith.constant 0 : index
      %c0_20 = arith.constant 0 : index
      %21 = vector.load %arg7[%c0_19, %c0_20] : memref<16x128xf32, #tpu.memory_space<vmem>>, vector<16x128xf32>
      tpu.vector_store %arg7[%c0_19, %c0_20], %20 {strides = array<i32>} : memref<16x128xf32, #tpu.memory_space<vmem>>, vector<16x128xf32>,
    } else {
    }
    return
  }
  func.func @transform_0(%arg0: i32, %arg1: i32) -> (i32, i32) {
    %c0_i32 = arith.constant 0 : i32
    %c0_i32_0 = arith.constant 0 : i32
    return %arg1, %c0_i32 : i32, i32
  }
  func.func @transform_1(%arg0: i32, %arg1: i32) -> (i32, i32) {
    %c0_i32 = arith.constant 0 : i32
    %c0_i32_0 = arith.constant 0 : i32
    return %arg1, %c0_i32 : i32, i32
  }
  func.func @transform_2(%arg0: i32, %arg1: i32) -> (i32, i32) {
    %c0_i32 = arith.constant 0 : i32
    return %arg0, %arg1 : i32, i32
  }
  func.func @transform_3(%arg0: i32, %arg1: i32) -> (i32, i32) {
    %c0_i32 = arith.constant 0 : i32
    %c0_i32_0 = arith.constant 0 : i32
    %c0_i32_1 = arith.constant 0 : i32
    return %c0_i32, %c0_i32_0 : i32, i32
  }
  func.func @transform_4(%arg0: i32, %arg1: i32) -> (i32, i32) {
    %c0_i32 = arith.constant 0 : i32
    %c0_i32_0 = arith.constant 0 : i32
    %c0_i32_1 = arith.constant 0 : i32
    return %c0_i32, %c0_i32_0 : i32, i32
  }
  func.func @transform_5(%arg0: i32, %arg1: i32) -> (i32, i32) {
    %c0_i32 = arith.constant 0 : i32
    %c0_i32_0 = arith.constant 0 : i32
    return %arg0, %c0_i32 : i32, i32
  }
}

</mosaic_0001>

<llo_original>
// kernel: tpu_custom_call.1
$region0: #{tpu_custom_call.1}
  #allocation0 [shape = 'u32[]', space=smem, size = 0x4, offset = 0x4, fixed_abs, tag = 'smem constant byte address 0x4 - core index']
  #allocation1 [shape = 'u32[72,128]{1,0:T(1,128)}', space=vmem, size = 0x9000, scoped, tag = 'internal scratch']
  #allocation2 [shape = 'f32[16,8]{1,0:T(8,128)}', space=vmem, size = 0x2000, scoped, tag = 'scratch operand']
  %s0 = inlined_call_operand.vmem [shape: f32[128,8], index: 0, kind: input, shape index: {}]
  %s1 = inlined_call_operand.vmem [shape: f32[128,8], index: 1, kind: input, shape index: {}]
  %s2 = inlined_call_operand.vmem [shape: f32[16,128], index: 2, kind: input, shape index: {}]
  %s3 = inlined_call_operand.vmem [shape: f32[8,128], index: 3, kind: input, shape index: {}]
  %s4 = inlined_call_operand.vmem [shape: f32[1,128], index: 4, kind: input, shape index: {}]
  %s5 = inlined_call_operand.hbm [shape: f32[16,128], index: 5, kind: output, shape index: {}]
  %s6 = sld [smem:[#allocation0]]
  $region38: #{tpu_custom_call.1} parent=0
    _
  %s8 = ssub.s32 1, %s6
  %s9 = scalar_select 0, %s8, %s6
  $region1: #{tpu_custom_call.1} parent=0
    #allocation3 [shape = 'u8[8192]{0}', space=vmem, size = 0x2000, scoped, tag = 'output window, operand 0, single buffered']
    #allocation4 [shape = 's32[1]{0}', space=sflag, size = 0x4, scoped, tag = 'scoped memory for tpu_custom_call.1']
    %10 = vsyncpa [#allocation4], 0
    // Predicated region
    $region2: #{tpu_custom_call.1} parent=1 // pred_check
      _
    $region3: #{tpu_custom_call.1} parent=1 // pred_check_branch
      %12 = sbr.rel (0) target = $region5
    $region4: #{tpu_custom_call.1} parent=1 // pred_region
      _
    $region5: #{tpu_custom_call.1} parent=1 // pred_fallthru
      _
    // Predicated region
    $region6: #{tpu_custom_call.1} parent=1 // pred_check
      _
    $region7: #{tpu_custom_call.1} parent=1 // pred_check_branch
      %14 = sbr.rel (0) target = $region9
    $region8: #{tpu_custom_call.1} parent=1 // pred_region
      _
    $region9: #{tpu_custom_call.1} parent=1 // pred_fallthru
      _
    // Predicated region
    $region10: #{tpu_custom_call.1} parent=1 // pred_check
      _
    $region11: #{tpu_custom_call.1} parent=1 // pred_check_branch
      %16 = sbr.rel (0) target = $region13
    $region12: #{tpu_custom_call.1} parent=1 // pred_region
      _
    $region13: #{tpu_custom_call.1} parent=1 // pred_fallthru
      _
    // Predicated region
    $region14: #{tpu_custom_call.1} parent=1 // pred_check
      _
    $region15: #{tpu_custom_call.1} parent=1 // pred_check_branch
      %18 = sbr.rel (0) target = $region17
    $region16: #{tpu_custom_call.1} parent=1 // pred_region
      _
    $region17: #{tpu_custom_call.1} parent=1 // pred_fallthru
      _
    // Predicated region
    $region18: #{tpu_custom_call.1} parent=1 // pred_check
      _
    $region19: #{tpu_custom_call.1} parent=1 // pred_check_branch
      %20 = sbr.rel (0) target = $region21
    $region20: #{tpu_custom_call.1} parent=1 // pred_region
      _
    $region21: #{tpu_custom_call.1} parent=1 // pred_fallthru
      _
    %p21 = scmp.eq.s32.totalorder 0, 0
    // Predicated region
    $region22: #{tpu_custom_call.1} parent=1 // pred_check
      %p22 = pneg %p21
    $region23: #{tpu_custom_call.1} parent=1 // pred_check_branch
      %24 = sbr.rel (%p22) target = $region25
    $region24: #{tpu_custom_call.1} parent=1 // pred_region
      %vm25 = vcmask 64512
      %26 = vst.msk [vmem:[#allocation2] sm:$0xff] %vm25, 0.0
      %27 = vst.msk [vmem:[#allocation2 + $0x8] sm:$0xff] %vm25, 0.0
    $region25: #{tpu_custom_call.1} parent=1 // pred_fallthru
      _
    %v28 = vld [vmem:[%s0] sm:$0xff]
    %v29 = vld [vmem:[%s0 + $0x8] sm:$0xff]
    %v30 = vld [vmem:[%s0 + $0x10] sm:$0xff]
    %v31 = vld [vmem:[%s0 + $0x18] sm:$0xff]
    %v32 = vld [vmem:[%s0 + $0x20] sm:$0xff]
    %v33 = vld [vmem:[%s0 + $0x28] sm:$0xff]
    %v34 = vld [vmem:[%s0 + $0x30] sm:$0xff]
    %v35 = vld [vmem:[%s0 + $0x38] sm:$0xff]
    %v36 = vld [vmem:[%s0 + $0x40] sm:$0xff]
    %v37 = vld [vmem:[%s0 + $0x48] sm:$0xff]
    %v38 = vld [vmem:[%s0 + $0x50] sm:$0xff]
    %v39 = vld [vmem:[%s0 + $0x58] sm:$0xff]
    %v40 = vld [vmem:[%s0 + $0x60] sm:$0xff]
    %v41 = vld [vmem:[%s0 + $0x68] sm:$0xff]
    %v42 = vld [vmem:[%s0 + $0x70] sm:$0xff]
    %v43 = vld [vmem:[%s0 + $0x78] sm:$0xff]
    %v44 = vld [vmem:[%s1] sm:$0xff]
    %v45 = vld [vmem:[%s1 + $0x8] sm:$0xff]
    %v46 = vld [vmem:[%s1 + $0x10] sm:$0xff]
    %v47 = vld [vmem:[%s1 + $0x18] sm:$0xff]
    %v48 = vld [vmem:[%s1 + $0x20] sm:$0xff]
    %v49 = vld [vmem:[%s1 + $0x28] sm:$0xff]
    %v50 = vld [vmem:[%s1 + $0x30] sm:$0xff]
    %v51 = vld [vmem:[%s1 + $0x38] sm:$0xff]
    %v52 = vld [vmem:[%s1 + $0x40] sm:$0xff]
    %v53 = vld [vmem:[%s1 + $0x48] sm:$0xff]
    %v54 = vld [vmem:[%s1 + $0x50] sm:$0xff]
    %v55 = vld [vmem:[%s1 + $0x58] sm:$0xff]
    %v56 = vld [vmem:[%s1 + $0x60] sm:$0xff]
    %v57 = vld [vmem:[%s1 + $0x68] sm:$0xff]
    %v58 = vld [vmem:[%s1 + $0x70] sm:$0xff]
    %v59 = vld [vmem:[%s1 + $0x78] sm:$0xff]
    %v60 = vmul.f32 %v28, %v44
    %v61 = vmul.f32 %v29, %v45
    %v62 = vmul.f32 %v30, %v46
    %v63 = vmul.f32 %v31, %v47
    %v64 = vmul.f32 %v32, %v48
    %v65 = vmul.f32 %v33, %v49
    %v66 = vmul.f32 %v34, %v50
    %v67 = vmul.f32 %v35, %v51
    %v68 = vmul.f32 %v36, %v52
    %v69 = vmul.f32 %v37, %v53
    %v70 = vmul.f32 %v38, %v54
    %v71 = vmul.f32 %v39, %v55
    %v72 = vmul.f32 %v40, %v56
    %v73 = vmul.f32 %v41, %v57
    %v74 = vmul.f32 %v42, %v58
    %v75 = vmul.f32 %v43, %v59
    %v76 = vld [vmem:[#allocation2] sm:$0xff]
    %v77 = vld [vmem:[#allocation2 + $0x8] sm:$0xff]
    %v78 = vld [vmem:[%s2] sm:$0xff]
    %v79 = vld [vmem:[%s2 + $0x8] sm:$0xff]
    %80 = vmatpush.msra.mxu0 %v75
    %81 = vmatpush.msra.mxu0 %v74
    %82 = vmatpush.msra.mxu0 %v73
    %83 = vmatpush.msra.mxu0 %v72
    %84 = vmatpush.msra.mxu0 %v71
    %85 = vmatpush.msra.mxu0 %v70
    %86 = vmatpush.msra.mxu0 %v69
    %87 = vmatpush.msra.mxu0 %v68
    %88 = vmatpush.msra.mxu0 %v67
    %89 = vmatpush.msra.mxu0 %v66
    %90 = vmatpush.msra.mxu0 %v65
    %91 = vmatpush.msra.mxu0 %v64
    %92 = vmatpush.msra.mxu0 %v63
    %93 = vmatpush.msra.mxu0 %v62
    %94 = vmatpush.msra.mxu0 %v61
    %95 = vmatpush.msra.mxu0 %v60
    %96 = vmatmul.f32.gmra.mxu0 %v78
    %v97 = vpop.f32.mrf.mxu0
    %v98 = vadd.f32 0.0, %v97
    %99 = vmatmul.f32.gmra.mxu0 %v79
    %v100 = vpop.f32.mrf.mxu0
    %v101 = vadd.f32 0.0, %v100
    %102 = vdwg.mxu0
    %v103 = vadd.f32 %v76, %v98
    %v104 = vadd.f32 %v77, %v101
    %vm105 = vcmask 64512
    %106 = vst.msk [vmem:[#allocation2] sm:$0xff] %vm105, %v103
    %107 = vst.msk [vmem:[#allocation2 + $0x8] sm:$0xff] %vm105, %v104
    // Predicated region
    $region26: #{tpu_custom_call.1} parent=1 // pred_check
      %p108 = pneg %p21
    $region27: #{tpu_custom_call.1} parent=1 // pred_check_branch
      %110 = sbr.rel (%p108) target = $region29
    $region28: #{tpu_custom_call.1} parent=1 // pred_region
      %v111 = vld [vmem:[#allocation2] sm:$0xff]
      %v112 = vld [vmem:[#allocation2 + $0x8] sm:$0xff]
      %v113 = vld [vmem:[%s3] sm:$0xff]
      %v114 = vld [vmem:[%s4] sm:$0x1]
      %v116 = vperm.slane %v114, 0
      %v119 = vsel %vm105, %v111, 0
      %v122 = vsel %vm105, %v112, 0
      %124 = vmatpush.msra.mxu0 0.0
      %125 = vmatpush.msra.mxu0 0.0
      %126 = vmatpush.msra.mxu0 0.0
      %127 = vmatpush.msra.mxu0 0.0
      %128 = vmatpush.msra.mxu0 0.0
      %129 = vmatpush.msra.mxu0 0.0
      %130 = vmatpush.msra.mxu0 0.0
      %131 = vmatpush.msra.mxu0 0.0
      %132 = vmatpush.msra.mxu0 0.0
      %133 = vmatpush.msra.mxu0 0.0
      %134 = vmatpush.msra.mxu0 0.0
      %135 = vmatpush.msra.mxu0 0.0
      %136 = vmatpush.msra.mxu0 0.0
      %137 = vmatpush.msra.mxu0 0.0
      %138 = vmatpush.msra.mxu0 0.0
      %139 = vmatpush.msra.mxu0 %v113
      %140 = vmatmul.f32.gmra.mxu0 %v119
      %v141 = vpop.f32.mrf.mxu0
      %v142 = vadd.f32 %v116, %v141
      %143 = vmatmul.f32.gmra.mxu0 %v122
      %v144 = vpop.f32.mrf.mxu0
      %v145 = vadd.f32 %v116, %v144
      %146 = vdwg.mxu0
      %v147 = vtanh.pop %v142
      %v148 = vtanh.pop %v145
      %149 = vst [vmem:[#allocation3] sm:$0xff] %v147
      %150 = vst [vmem:[#allocation3 + $0x8] sm:$0xff] %v148
    $region29: #{tpu_custom_call.1} parent=1 // pred_fallthru
      _
    // Predicated region
    $region30: #{tpu_custom_call.1} parent=1 // pred_check
      _
    $region31: #{tpu_custom_call.1} parent=1 // pred_check_branch
      %152 = sbr.rel (0) target = $region33
    $region32: #{tpu_custom_call.1} parent=1 // pred_region
      %154 = vsyncadd [#allocation4], 0
      %s155 = sshll.u32 [#allocation3], 4
      %s156 = int_to_ptr.vmem [resolvable:$true] %s155
      %s157 = sshll.u32 %s5, 4
      %s158 = int_to_ptr.hbm [resolvable:$true] %s157
      %163 = dma.vmem_to_hbm [thread:$0]  %s156, 256, %s158, [#allocation4], 128, 128, 8
    $region33: #{tpu_custom_call.1} parent=1 // pred_fallthru
      _
    // Predicated region
    $region34: #{tpu_custom_call.1} parent=1 // pred_check
      _
    $region35: #{tpu_custom_call.1} parent=1 // pred_check_branch
      %165 = sbr.rel (0) target = $region37
    $region36: #{tpu_custom_call.1} parent=1 // pred_region
      %167 = dma.done [#allocation4], 256
    $region37: #{tpu_custom_call.1} parent=1 // pred_fallthru
      _
    %168 = vsyncpa [#allocation4], 1

</llo_original>
